<compile_context>
chip_gen: v7x
topology: tpu7x:2x2x1
jax: 0.10.0
libtpu: 0.0.40
codegen_flags: <defaults>
</compile_context>

<pallas_src>
import functools

import jax
import jax.numpy as jnp
from jax.experimental import pallas as pl
from jax.experimental.pallas import tpu as pltpu


# ----------------------------- Pallas kernel ---------------------------------------

def _fused_dcn_matmul_kernel(a_ref, w_ref, scale_ref, shift_ref, o_ref, acc_ref, *,
                             apply_relu):
    """One (out_ch, tm) output tile:  relu( (W @ A) * scale + shift ).

    a_ref:     (tk, tm)   bf16  -- cols block (K on sublanes, M on lanes)
    w_ref:     (out_ch, tk) bf16
    scale_ref: (out_ch, 1) f32  -- BN scale, broadcast over lanes
    shift_ref: (out_ch, 1) f32  -- folded conv-bias + BN shift
    o_ref:     (out_ch, tm) f32
    acc_ref:   (out_ch, tm) f32 scratch accumulator (resident across the K axis)
    """
    k = pl.program_id(2)

    @pl.when(k == 0)
    def _init():
        acc_ref[...] = jnp.zeros_like(acc_ref)

    acc_ref[...] += jnp.dot(w_ref[...], a_ref[...],
                            preferred_element_type=jnp.float32)

    @pl.when(k == pl.num_programs(2) - 1)
    def _finalize():
        out = acc_ref[...] * scale_ref[...] + shift_ref[...]
        if apply_relu:
            out = jnp.maximum(out, 0.0)
        o_ref[...] = out.astype(o_ref.dtype)


def _select_tiles(K, HW):
    """Pick (tm, tk): big lane-dense M tile, K tile that divides K and fits VMEM."""
    # M tile: full HW if it already fits, else a large multiple of 128.
    tm = HW if HW <= 1024 else 1024
    # K tile: keep whole K when the (tk, tm) bf16 block is small; otherwise split
    # over channel groups (tk = 9*c must divide K and stay a multiple of 8).
    budget = 8 << 20  # per-buffer budget for the cols block
    tk = K
    if K * tm * 2 > budget:
        C = K // 9
        start = C - (C % 8)
        for c in range(start, 7, -8):
            if C % c == 0 and 9 * c * tm * 2 <= budget:
                tk = 9 * c
                break
    return tm, tk


def fused_dcn_matmul(cols, w, scale, shift, *, apply_relu=True):
    """cols: (N, K, HW) bf16; w: (out_ch, K); scale/shift: (out_ch,).

    Returns (N, out_ch, HW) f32 = relu( einsum('ok,nkm->nom', w, cols)*scale + shift ).
    """
    N, K, HW = cols.shape
    out_ch = w.shape[0]
    tm, tk = _select_tiles(K, HW)
    m_tiles = pl.cdiv(HW, tm)
    num_k = pl.cdiv(K, tk)          # tk either == K or divides K exactly

    w_b = w.astype(jnp.bfloat16)
    scale2 = scale.reshape(out_ch, 1).astype(jnp.float32)
    shift2 = shift.reshape(out_ch, 1).astype(jnp.float32)

    # VMEM budget: double-buffered cols / weights / output + accumulator scratch.
    block_bytes = (2 * tk * tm * 2 + 2 * out_ch * tk * 2
                   + 2 * out_ch * tm * 4 + out_ch * tm * 4 + 4 * out_ch * 4)
    vmem_limit = int(min(max(4 * block_bytes, 32 << 20), 48 << 20))

    return pl.pallas_call(
        functools.partial(_fused_dcn_matmul_kernel, apply_relu=apply_relu),
        out_shape=jax.ShapeDtypeStruct((N, out_ch, HW), jnp.float32),
        grid=(N, m_tiles, num_k),
        in_specs=[
            pl.BlockSpec((None, tk, tm), lambda b, i, k: (b, k, i)),   # cols
            pl.BlockSpec((out_ch, tk), lambda b, i, k: (0, k)),        # weights
            pl.BlockSpec((out_ch, 1), lambda b, i, k: (0, 0)),         # BN scale
            pl.BlockSpec((out_ch, 1), lambda b, i, k: (0, 0)),         # BN shift
        ],
        out_specs=pl.BlockSpec((None, out_ch, tm), lambda b, i, k: (b, 0, i)),
        scratch_shapes=[pltpu.VMEM((out_ch, tm), jnp.float32)],
        compiler_params=pltpu.CompilerParams(
            dimension_semantics=("parallel", "parallel", "arbitrary"),
            vmem_limit_bytes=vmem_limit),
    )(cols.astype(jnp.bfloat16), w_b, scale2, shift2)


# ------------------------------ JAX glue --------------------------------------------

def dcn_sample_cols(x, off_y, off_x, mask, pad=1, stride=1, dilation=1):
    """Modulated deformable im2col (DCNv2 semantics, deformable_groups=1).

    x:      (N, C, H, W)
    off_y:  (N, 9, H, W)  per-tap y offsets (tap t = ky*3 + kx)
    off_x:  (N, 9, H, W)  per-tap x offsets
    mask:   (N, 9, H, W)  already sigmoid-ed modulation
    Returns cols (N, C*9, H*W) bf16 with row index c*9 + t (matching
    w_dcn.reshape(out_ch, C*9) column order).
    """
    # TODO(synk): the bilinear gather is data-dependent indexing; kept as a single
    # fused weighted-gather in JAX glue rather than an in-kernel DMA/VMEM gather.
    N, C, H, W = x.shape
    HW = H * W

    ky, kx = jnp.meshgrid(jnp.arange(3), jnp.arange(3), indexing="ij")
    ky = ky.reshape(9).astype(jnp.float32)
    kx = kx.reshape(9).astype(jnp.float32)

    base_h = (jnp.arange(H, dtype=jnp.float32)[None, :, None] * stride - pad
              + ky[:, None, None] * dilation)                    # (9, H, 1)
    base_w = (jnp.arange(W, dtype=jnp.float32)[None, None, :] * stride - pad
              + kx[:, None, None] * dilation)                    # (9, 1, W)
    ph = base_h[None] + off_y                                    # (N, 9, H, W)
    pw = base_w[None] + off_x

    h0 = jnp.floor(ph)
    w0 = jnp.floor(pw)
    lh = ph - h0
    lw = pw - w0
    hh = 1.0 - lh
    hw = 1.0 - lw
    h0i = h0.astype(jnp.int32)
    w0i = w0.astype(jnp.int32)

    # Fold the DCNv2 validity check and the modulation mask into the bilinear weights
    # (one cheap (N,9,H,W)-sized pass instead of an extra pass over the C*9 expansion).
    valid = ((ph > -1.0) & (pw > -1.0) & (ph < H) & (pw < W)).astype(jnp.float32)
    mod = valid * mask

    x_flat = x.reshape(N, C, HW).astype(jnp.bfloat16)

    def corner(hi, wi, wgt):
        inb = ((hi >= 0) & (hi < H) & (wi >= 0) & (wi < W)).astype(jnp.float32)
        hc = jnp.clip(hi, 0, H - 1)
        wc = jnp.clip(wi, 0, W - 1)
        idx = (hc * W + wc).reshape(N, 9 * HW)
        w_all = (wgt * inb * mod).reshape(N, 1, 9 * HW).astype(jnp.bfloat16)
        g = jax.vmap(lambda xn, ixn: xn[:, ixn])(x_flat, idx)    # (N, C, 9*HW) bf16
        return g * w_all

    val = (corner(h0i,     w0i,     hh * hw)
           + corner(h0i,     w0i + 1, hh * lw)
           + corner(h0i + 1, w0i,     lh * hw)
           + corner(h0i + 1, w0i + 1, lh * lw))                  # (N, C, 9*HW)

    # (N, C, 9*HW) -> (N, C*9, HW) is a pure reshape (tap index is HW-major inside j).
    return val.reshape(N, C * 9, HW)


# ------------------------------ Module forward ---------------------------------------

def init_params(key, in_ch, out_ch):
    k1, k2, k3 = jax.random.split(key, 3)
    n = in_ch * 9
    stdv = 1.0 / (n ** 0.5)
    # DCN main weight/bias (DCNv2 reset_parameters: uniform(-stdv, stdv), bias zero)
    w_dcn = jax.random.uniform(k1, (out_ch, in_ch, 3, 3), jnp.float32, -stdv, stdv)
    b_dcn = jnp.zeros((out_ch,), jnp.float32)
    # conv_offset_mask: the module zero-inits it; use small deterministic random
    # values here so the deformable bilinear-sampling path is actually exercised.
    w_off = 0.1 * jax.random.normal(k2, (27, in_ch, 3, 3), jnp.float32)
    b_off = 0.1 * jax.random.normal(k3, (27,), jnp.float32)
    # BatchNorm2d (inference / running-stats form)
    bn_gamma = jnp.ones((out_ch,), jnp.float32)
    bn_beta = jnp.zeros((out_ch,), jnp.float32)
    bn_mean = jnp.zeros((out_ch,), jnp.float32)
    bn_var = jnp.ones((out_ch,), jnp.float32)
    return dict(w_dcn=w_dcn, b_dcn=b_dcn, w_off=w_off, b_off=b_off,
                bn_gamma=bn_gamma, bn_beta=bn_beta, bn_mean=bn_mean, bn_var=bn_var)


def deform_conv_forward(x, params):
    """x: (N, in_ch, H, W) NCHW  ->  (N, out_ch, H, W) NCHW."""
    N, C, H, W = x.shape
    out_ch = params["w_dcn"].shape[0]

    # 1) conv_offset_mask: 27-channel 3x3/s1/p1 conv.  Per the perf review, XLA's conv
    #    (no 9x im2col expansion, no 27-lane Pallas store path) is the right tool here.
    om = jax.lax.conv_general_dilated(
        x.astype(jnp.bfloat16), params["w_off"].astype(jnp.bfloat16),
        window_strides=(1, 1), padding=((1, 1), (1, 1)),
        dimension_numbers=("NCHW", "OIHW", "NCHW"),
        preferred_element_type=jnp.float32)
    om = om + params["b_off"].reshape(1, 27, 1, 1)
    # DCNv2: chunk -> (o1, o2, mask); cat(o1, o2) is read (y, x) interleaved per tap.
    off_y = om[:, 0:18:2]
    off_x = om[:, 1:18:2]
    mask = jax.nn.sigmoid(om[:, 18:27])

    # 2) Modulated deformable im2col (single fused weighted gather, bf16) producing
    #    cols directly in the (N, C*9, H*W) layout the Pallas kernel consumes.
    cols = dcn_sample_cols(x, off_y, off_x, mask)

    # 3) Fused DCN matmul + bias + BatchNorm(running stats) + ReLU in Pallas,
    #    lane-dense (out_ch, H*W) output blocks -> NCHW via a free reshape.
    w_d = params["w_dcn"].reshape(out_ch, C * 9)
    s = params["bn_gamma"] / jnp.sqrt(params["bn_var"] + 1e-5)
    shift = (params["b_dcn"] - params["bn_mean"]) * s + params["bn_beta"]
    y = fused_dcn_matmul(cols, w_d, s, shift, apply_relu=True)    # (N, out_ch, H*W)
    return y.reshape(N, out_ch, H, W)


if __name__ == "__main__":
    key = jax.random.PRNGKey(0)
    kx_, kp = jax.random.split(key)
    in_ch, out_ch = 4, 8
    x = jax.random.normal(kx_, (2, in_ch, 16, 16), dtype=jnp.float32)
    params = init_params(kp, in_ch, out_ch)

    y = jax.jit(deform_conv_forward)(x, params)
    jax.block_until_ready(y)
    assert y.shape == (2, out_ch, 16, 16), y.shape
    assert bool(jnp.all(y >= 0.0))  # ReLU epilogue
    print("KERNEL_OK")
</pallas_src>

<mosaic_0001>
module attributes {stable_mosaic.version = 11 : i64} {
  func.func @_fused_dcn_matmul_kernel(%arg0: i32, %arg1: i32, %arg2: i32, %arg3: memref<1x36x256xbf16, #tpu.memory_space<vmem>>, %arg4: memref<8x36xbf16, #tpu.memory_space<vmem>>, %arg5: memref<8x1xf32, #tpu.memory_space<vmem>>, %arg6: memref<8x1xf32, #tpu.memory_space<vmem>>, %arg7: memref<1x8x256xf32, #tpu.memory_space<vmem>>, %arg8: memref<8x256xf32, #tpu.memory_space<vmem>>) attributes {dimension_semantics = [#tpu.dimension_semantics<parallel>, #tpu.dimension_semantics<parallel>, #tpu.dimension_semantics<arbitrary>], iteration_bounds = array<i64: 2, 1, 1>, scalar_prefetch = 0 : i64, scratch_operands = 1 : i64, tpu.core_type = #tpu.core_type<tc>, window_params = [{transform_indices = @transform_0, window_bounds = array<i64: 1, 36, 256>}, {transform_indices = @transform_1, window_bounds = array<i64: 8, 36>}, {pipeline_mode = #tpu.pipeline_mode<synchronous>, transform_indices = @transform_2, window_bounds = array<i64: 8, 1>}, {pipeline_mode = #tpu.pipeline_mode<synchronous>, transform_indices = @transform_3, window_bounds = array<i64: 8, 1>}, {transform_indices = @transform_4, window_bounds = array<i64: 1, 8, 256>}]} {
    %c0_i32 = arith.constant 0 : i32
    %0 = arith.cmpi eq, %arg2, %c0_i32 : i32
    %1 = arith.extui %0 : i1 to i32
    %c0_i32_0 = arith.constant 0 : i32
    %2 = arith.cmpi ne, %1, %c0_i32_0 : i32
    scf.if %2 {
      %cst_11 = arith.constant 0.000000e+00 : f32
      %13 = vector.broadcast %cst_11 : f32 to vector<8x256xf32>
      %c0_12 = arith.constant 0 : index
      %c0_13 = arith.constant 0 : index
      %14 = vector.load %arg8[%c0_12, %c0_13] : memref<8x256xf32, #tpu.memory_space<vmem>>, vector<8x256xf32>
      tpu.vector_store %arg8[%c0_12, %c0_13], %13 {strides = array<i32>} : memref<8x256xf32, #tpu.memory_space<vmem>>, vector<8x256xf32>,
    } else {
    }
    %c0 = arith.constant 0 : index
    %c0_1 = arith.constant 0 : index
    %3 = vector.load %arg8[%c0, %c0_1] : memref<8x256xf32, #tpu.memory_space<vmem>>, vector<8x256xf32>
    %c0_2 = arith.constant 0 : index
    %c0_3 = arith.constant 0 : index
    %4 = vector.load %arg4[%c0_2, %c0_3] : memref<8x36xbf16, #tpu.memory_space<vmem>>, vector<8x36xbf16>
    %c0_4 = arith.constant 0 : index
    %c0_5 = arith.constant 0 : index
    %c0_6 = arith.constant 0 : index
    %5 = vector.load %arg3[%c0_4, %c0_5, %c0_6] : memref<1x36x256xbf16, #tpu.memory_space<vmem>>, vector<1x36x256xbf16>
    %6 = vector.shape_cast %5 : vector<1x36x256xbf16> to vector<36x256xbf16>
    %cst = arith.constant dense<0.000000e+00> : vector<8x256xf32>
    %7 = tpu.matmul %4, %6, %cst {dimension_numbers = #tpu.dot_dimension_numbers<[1], [0], [0], [1], [0, 0, 1, 1], [], []>} : vector<8x36xbf16>, vector<36x256xbf16>, vector<8x256xf32> -> vector<8x256xf32>
    %8 = arith.addf %3, %7 : vector<8x256xf32>
    %c0_7 = arith.constant 0 : index
    %c0_8 = arith.constant 0 : index
    %9 = vector.load %arg8[%c0_7, %c0_8] : memref<8x256xf32, #tpu.memory_space<vmem>>, vector<8x256xf32>
    tpu.vector_store %arg8[%c0_7, %c0_8], %8 {strides = array<i32>} : memref<8x256xf32, #tpu.memory_space<vmem>>, vector<8x256xf32>,
    %c0_i32_9 = arith.constant 0 : i32
    %10 = arith.cmpi eq, %arg2, %c0_i32_9 : i32
    %11 = arith.extui %10 : i1 to i32
    %c0_i32_10 = arith.constant 0 : i32
    %12 = arith.cmpi ne, %11, %c0_i32_10 : i32
    scf.if %12 {
      %c0_11 = arith.constant 0 : index
      %c0_12 = arith.constant 0 : index
      %13 = vector.load %arg8[%c0_11, %c0_12] : memref<8x256xf32, #tpu.memory_space<vmem>>, vector<8x256xf32>
      %c0_13 = arith.constant 0 : index
      %c0_14 = arith.constant 0 : index
      %14 = vector.load %arg5[%c0_13, %c0_14] : memref<8x1xf32, #tpu.memory_space<vmem>>, vector<8x1xf32>
      %15 = vector.broadcast %14 : vector<8x1xf32> to vector<8x256xf32>
      %16 = arith.mulf %13, %15 : vector<8x256xf32>
      %c0_15 = arith.constant 0 : index
      %c0_16 = arith.constant 0 : index
      %17 = vector.load %arg6[%c0_15, %c0_16] : memref<8x1xf32, #tpu.memory_space<vmem>>, vector<8x1xf32>
      %18 = vector.broadcast %17 : vector<8x1xf32> to vector<8x256xf32>
      %19 = arith.addf %16, %18 : vector<8x256xf32>
      %cst_17 = arith.constant 0.000000e+00 : f32
      %20 = vector.broadcast %cst_17 : f32 to vector<8x256xf32>
      %21 = arith.maximumf %19, %20 : vector<8x256xf32>
      %c0_18 = arith.constant 0 : index
      %c0_19 = arith.constant 0 : index
      %c0_20 = arith.constant 0 : index
      %22 = vector.load %arg7[%c0_18, %c0_19, %c0_20] : memref<1x8x256xf32, #tpu.memory_space<vmem>>, vector<1x8x256xf32>
      %23 = vector.shape_cast %22 : vector<1x8x256xf32> to vector<8x256xf32>
      %24 = vector.shape_cast %21 : vector<8x256xf32> to vector<1x8x256xf32>
      tpu.vector_store %arg7[%c0_18, %c0_19, %c0_20], %24 {strides = array<i32>} : memref<1x8x256xf32, #tpu.memory_space<vmem>>, vector<1x8x256xf32>,
    } else {
    }
    return
  }
  func.func @transform_0(%arg0: i32, %arg1: i32, %arg2: i32) -> (i32, i32, i32) {
    %c0_i32 = arith.constant 0 : i32
    return %arg0, %arg2, %arg1 : i32, i32, i32
  }
  func.func @transform_1(%arg0: i32, %arg1: i32, %arg2: i32) -> (i32, i32) {
    %c0_i32 = arith.constant 0 : i32
    %c0_i32_0 = arith.constant 0 : i32
    return %c0_i32, %arg2 : i32, i32
  }
  func.func @transform_2(%arg0: i32, %arg1: i32, %arg2: i32) -> (i32, i32) {
    %c0_i32 = arith.constant 0 : i32
    %c0_i32_0 = arith.constant 0 : i32
    %c0_i32_1 = arith.constant 0 : i32
    return %c0_i32, %c0_i32_0 : i32, i32
  }
  func.func @transform_3(%arg0: i32, %arg1: i32, %arg2: i32) -> (i32, i32) {
    %c0_i32 = arith.constant 0 : i32
    %c0_i32_0 = arith.constant 0 : i32
    %c0_i32_1 = arith.constant 0 : i32
    return %c0_i32, %c0_i32_0 : i32, i32
  }
  func.func @transform_4(%arg0: i32, %arg1: i32, %arg2: i32) -> (i32, i32, i32) {
    %c0_i32 = arith.constant 0 : i32
    %c0_i32_0 = arith.constant 0 : i32
    return %arg0, %c0_i32, %arg1 : i32, i32, i32
  }
}

</mosaic_0001>

<llo_original>
// kernel: deform_conv_forward.1
$region0: #{deform_conv_forward.1}
  #allocation0 [shape = 'u32[]', space=smem, size = 0x4, offset = 0x4, fixed_abs, tag = 'smem constant byte address 0x4 - core index']
  #allocation1 [shape = 'u32[144,128]{1,0:T(1,128)}', space=vmem, size = 0x12000, scoped, tag = 'internal scratch']
  #allocation2 [shape = 'f32[8,256]{1,0:T(8,128)}', space=vmem, size = 0x2000, scoped, tag = 'scratch operand']
  %s0 = inlined_call_operand.vmem [shape: bf16[2,36,256], index: 0, kind: input, shape index: {}]
  %s1 = inlined_call_operand.vmem [shape: bf16[8,36], index: 1, kind: input, shape index: {}]
  %s2 = inlined_call_operand.vmem [shape: f32[8,1], index: 2, kind: input, shape index: {}]
  %s3 = inlined_call_operand.vmem [shape: f32[8,1], index: 3, kind: input, shape index: {}]
  %s4 = inlined_call_operand.vmem [shape: f32[2,8,256], index: 4, kind: output, shape index: {}]
  %s5 = sld [smem:[#allocation0]]
  $region57: #{deform_conv_forward.1} parent=0
    _
  %s7 = ssub.s32 1, %s5
  %s8 = scalar_select 0, %s7, %s5
  loop: start=0, step=1, limit=4
  $region2: #{deform_conv_forward.1} parent=0 // loop_pre_header
    _
  $region3: #{deform_conv_forward.1} parent=0 // loop_header
    %s10 = sphi 0, %s14
    %p11 = scmp.ge.s32.totalorder %s10, 4
    %s17 = sphi 0, %s36
    %s18 = sphi 0, %s32
    %s19 = sphi 0, %s28
    %s20 = sphi 0, %s17
    %s21 = sphi 0, %s18
    %s22 = sphi 0, %s19
    %s23 = sphi 0, %s20
    %s24 = sphi 0, %s21
    %s25 = sphi 0, %s22
    %s43 = sphi 0, %s45
    %s46 = sphi 0, %s43
    %s47 = sphi 0, %s46
    %s63 = sphi 0, %s47
    %s69 = sphi 0, %s71
    %s72 = sphi 0, %s69
    %s73 = sphi 0, %s72
    %s89 = sphi 0, %s73
    %s93 = sphi 0, %s93
    %s95 = sphi 0, %s93
    %s96 = sphi 0, %s95
    %s110 = sphi 0, %s96
    %s114 = sphi 0, %s114
    %s116 = sphi 0, %s114
    %s117 = sphi 0, %s116
    %s131 = sphi 0, %s117
    %s139 = sphi 0, %s141
    %s142 = sphi 0, %s139
    %s143 = sphi 0, %s142
    %s159 = sphi 0, %s143
  $region4: #{deform_conv_forward.1} parent=0 // loop_header_branch
    %13 = sbr.rel (%p11) target = $region8
  $region5: #{deform_conv_forward.1} parent=0 // loop_body
    %s15 = ssub.s32 %s10, 1
    %s16 = ssub.s32 %s10, 2
    %s26 = sadd.s32 1, %s19
    %p27 = scmp.ge.s32.totalorder %s26, 1
    %s28 = scalar_select %p27, 0, %s26
    %s29 = sadd.s32 1, %s18
    %s30 = scalar_select %p27, %s29, %s18
    %p31 = scmp.ge.s32.totalorder %s30, 1
    %s32 = scalar_select %p31, 0, %s30
    %s33 = sadd.s32 1, %s17
    %s34 = scalar_select %p31, %s33, %s17
    %p35 = scmp.ge.s32.totalorder %s34, 2
    %s36 = scalar_select %p35, 0, %s34
    %s37 = ssub.s32 %s17, %s36
    %s38 = ssub.s32 %s19, %s28
    %s39 = sor.u32 %s37, %s38
    %s40 = ssub.s32 %s18, %s32
    %s41 = sor.u32 %s39, %s40
    %p42 = scmp.eq.s32.totalorder %s41, 0
    %s44 = sadd.s32 %s43, 1
    %s45 = scalar_select %p42, %s43, %s44
    %p48 = pneg %p42
    %p49 = scmp.eq.s32.totalorder %s10, 1
    %p50 = por %p48, %p49
    %p51 = scmp.ne.s32.totalorder %s43, %s46
    %p52 = scmp.eq.s32.totalorder %s10, 0
    %p53 = por %p51, %p52
    %p54 = scmp.ne.s32.totalorder %s43, %s46
    %p55 = scmp.eq.s32.totalorder %s15, 1
    %p56 = por %p54, %p55
    %p57 = scmp.ne.s32.totalorder %s46, %s47
    %p58 = scmp.eq.s32.totalorder %s15, 0
    %p59 = por %p57, %p58
    %p60 = scmp.ne.s32.totalorder %s46, %s47
    %p61 = scmp.eq.s32.totalorder %s16, 1
    %p62 = por %p60, %p61
    %p64 = scmp.ne.s32.totalorder %s47, %s63
    %p65 = scmp.eq.s32.totalorder %s16, 0
    %p66 = por %p64, %p65
    %s67 = ssub.s32 %s19, %s28
    %p68 = scmp.eq.s32.totalorder %s67, 0
    %s70 = sadd.s32 %s69, 1
    %s71 = scalar_select %p68, %s69, %s70
    %p74 = pneg %p68
    %p75 = scmp.eq.s32.totalorder %s10, 1
    %p76 = por %p74, %p75
    %p77 = scmp.ne.s32.totalorder %s69, %s72
    %p78 = scmp.eq.s32.totalorder %s10, 0
    %p79 = por %p77, %p78
    %p80 = scmp.ne.s32.totalorder %s69, %s72
    %p81 = scmp.eq.s32.totalorder %s15, 1
    %p82 = por %p80, %p81
    %p83 = scmp.ne.s32.totalorder %s72, %s73
    %p84 = scmp.eq.s32.totalorder %s15, 0
    %p85 = por %p83, %p84
    %p86 = scmp.ne.s32.totalorder %s72, %s73
    %p87 = scmp.eq.s32.totalorder %s16, 1
    %p88 = por %p86, %p87
    %p90 = scmp.ne.s32.totalorder %s73, %s89
    %p91 = scmp.eq.s32.totalorder %s16, 0
    %p92 = por %p90, %p91
    %s94 = sadd.s32 %s93, 1
    %p97 = scmp.eq.s32.totalorder %s10, 1
    %p98 = scmp.ne.s32.totalorder %s93, %s95
    %p99 = scmp.eq.s32.totalorder %s10, 0
    %p100 = por %p98, %p99
    %p101 = scmp.ne.s32.totalorder %s93, %s95
    %p102 = scmp.eq.s32.totalorder %s15, 1
    %p103 = por %p101, %p102
    %p104 = scmp.ne.s32.totalorder %s95, %s96
    %p105 = scmp.eq.s32.totalorder %s15, 0
    %p106 = por %p104, %p105
    %p107 = scmp.ne.s32.totalorder %s95, %s96
    %p108 = scmp.eq.s32.totalorder %s16, 1
    %p109 = por %p107, %p108
    %p111 = scmp.ne.s32.totalorder %s96, %s110
    %p112 = scmp.eq.s32.totalorder %s16, 0
    %p113 = por %p111, %p112
    %s115 = sadd.s32 %s114, 1
    %p118 = scmp.eq.s32.totalorder %s10, 1
    %p119 = scmp.ne.s32.totalorder %s114, %s116
    %p120 = scmp.eq.s32.totalorder %s10, 0
    %p121 = por %p119, %p120
    %p122 = scmp.ne.s32.totalorder %s114, %s116
    %p123 = scmp.eq.s32.totalorder %s15, 1
    %p124 = por %p122, %p123
    %p125 = scmp.ne.s32.totalorder %s116, %s117
    %p126 = scmp.eq.s32.totalorder %s15, 0
    %p127 = por %p125, %p126
    %p128 = scmp.ne.s32.totalorder %s116, %s117
    %p129 = scmp.eq.s32.totalorder %s16, 1
    %p130 = por %p128, %p129
    %p132 = scmp.ne.s32.totalorder %s117, %s131
    %p133 = scmp.eq.s32.totalorder %s16, 0
    %p134 = por %p132, %p133
    %s135 = ssub.s32 %s17, %s36
    %s136 = ssub.s32 %s18, %s32
    %s137 = sor.u32 %s135, %s136
    %p138 = scmp.eq.s32.totalorder %s137, 0
    %s140 = sadd.s32 %s139, 1
    %s141 = scalar_select %p138, %s139, %s140
    %p144 = pneg %p138
    %p145 = scmp.eq.s32.totalorder %s10, 1
    %p146 = por %p144, %p145
    %p147 = scmp.ne.s32.totalorder %s139, %s142
    %p148 = scmp.eq.s32.totalorder %s10, 0
    %p149 = por %p147, %p148
    %p150 = scmp.ne.s32.totalorder %s139, %s142
    %p151 = scmp.eq.s32.totalorder %s15, 1
    %p152 = por %p150, %p151
    %p153 = scmp.ne.s32.totalorder %s142, %s143
    %p154 = scmp.eq.s32.totalorder %s15, 0
    %p155 = por %p153, %p154
    %p156 = scmp.ne.s32.totalorder %s142, %s143
    %p157 = scmp.eq.s32.totalorder %s16, 1
    %p158 = por %p156, %p157
    %p160 = scmp.ne.s32.totalorder %s143, %s159
    %p161 = scmp.eq.s32.totalorder %s16, 0
    %p162 = por %p160, %p161
    %p163 = scmp.le.s32.totalorder 1, %s10
    %p164 = scmp.lt.s32.totalorder %s10, 3
    %p165 = pnand %p163, %p164
    %p166 = pneg %p165
    // Predicated region
    $region9: #{deform_conv_forward.1} parent=5 // pred_check
      _
    $region10: #{deform_conv_forward.1} parent=5 // pred_check_branch
      %168 = sbr.rel (%p165) target = $region12
    $region11: #{deform_conv_forward.1} parent=5 // pred_region
      %s169 = ssub.s32 %s10, 1
      // Predicated region
      $region13: #{deform_conv_forward.1} parent=11 // pred_check
        %p170 = pneg %p85
      $region14: #{deform_conv_forward.1} parent=11 // pred_check_branch
        %172 = sbr.rel (%p170) target = $region16
      $region15: #{deform_conv_forward.1} parent=11 // pred_region
        %p173 = scmp.lt.s32.totalorder %s22, 0
        %s174 = scalar_select %p173, %s22, 0
        %s175 = smul.addr %s174, 4
        %s176 = scalar_lea.vmem %s1, %s175
      $region16: #{deform_conv_forward.1} parent=11 // pred_fallthru
        _
      // Predicated region
      $region17: #{deform_conv_forward.1} parent=11 // pred_check
        %p177 = pneg %p106
      $region18: #{deform_conv_forward.1} parent=11 // pred_check_branch
        %179 = sbr.rel (%p177) target = $region20
      $region19: #{deform_conv_forward.1} parent=11 // pred_region
        _
      $region20: #{deform_conv_forward.1} parent=11 // pred_fallthru
        _
      // Predicated region
      $region21: #{deform_conv_forward.1} parent=11 // pred_check
        %p180 = pneg %p127
      $region22: #{deform_conv_forward.1} parent=11 // pred_check_branch
        %182 = sbr.rel (%p180) target = $region24
      $region23: #{deform_conv_forward.1} parent=11 // pred_region
        _
      $region24: #{deform_conv_forward.1} parent=11 // pred_fallthru
        _
    $region12: #{deform_conv_forward.1} parent=5 // pred_fallthru
      _
    %p183 = scmp.lt.s32.totalorder %s10, 2
    // Predicated region
    $region25: #{deform_conv_forward.1} parent=5 // pred_check
      %p184 = pneg %p183
    $region26: #{deform_conv_forward.1} parent=5 // pred_check_branch
      %186 = sbr.rel (%p184) target = $region28
    $region27: #{deform_conv_forward.1} parent=5 // pred_region
      // Predicated region
      $region29: #{deform_conv_forward.1} parent=27 // pred_check
        %p187 = pneg %p53
      $region30: #{deform_conv_forward.1} parent=27 // pred_check_branch
        %189 = sbr.rel (%p187) target = $region32
      $region31: #{deform_conv_forward.1} parent=27 // pred_region
        %s190 = smul.u32 5, %s19
        %s191 = smul.u32 2, %s18
        %p192 = scmp.lt.s32.totalorder %s17, 1
        %s193 = scalar_select %p192, %s17, 1
        %p194 = scmp.lt.s32.totalorder %s190, 4
        %s195 = scalar_select %p194, %s190, 4
        %p196 = scmp.lt.s32.totalorder %s191, 1
        %s197 = scalar_select %p196, %s191, 1
        %s198 = smul.addr %s195, 2
        %s199 = sadd.s32 %s197, %s198
        %s200 = smul.addr %s193, 10
        %s201 = sadd.s32 %s199, %s200
        %s202 = smul.addr %s201, 4
        %s203 = scalar_lea.vmem %s0, %s202
        %s204 = smul.u32 5, %s19
        %s205 = smul.u32 2, %s18
      $region32: #{deform_conv_forward.1} parent=27 // pred_fallthru
        _
    $region28: #{deform_conv_forward.1} parent=5 // pred_fallthru
      _
    %p206 = scmp.le.s32.totalorder 1, %s10
    %p207 = scmp.lt.s32.totalorder %s10, 3
    %p208 = pnand %p206, %p207
    %p209 = pneg %p208
    // Predicated region
    $region33: #{deform_conv_forward.1} parent=5 // pred_check
      _
    $region34: #{deform_conv_forward.1} parent=5 // pred_check_branch
      %211 = sbr.rel (%p208) target = $region36
    $region35: #{deform_conv_forward.1} parent=5 // pred_region
      %s212 = ssub.s32 %s10, 1
      %s213 = smul.u32 5, %s22
      %s214 = smul.u32 2, %s21
      %p215 = scmp.lt.s32.totalorder %s20, 1
      %s216 = scalar_select %p215, %s20, 1
      %p217 = scmp.lt.s32.totalorder %s213, 4
      %s218 = scalar_select %p217, %s213, 4
      %p219 = scmp.lt.s32.totalorder %s214, 1
      %s220 = scalar_select %p219, %s214, 1
      %s221 = smul.addr %s218, 2
      %s222 = sadd.s32 %s220, %s221
      %s223 = smul.addr %s216, 10
      %s224 = sadd.s32 %s222, %s223
      %s225 = smul.addr %s224, 4
      %s226 = scalar_lea.vmem %s0, %s225
      %p227 = pneg %p59
      %p228 = pneg %p56
      %p229 = scmp.lt.s32.totalorder %s22, 0
      %s230 = scalar_select %p229, %s22, 0
      %s231 = smul.addr %s230, 4
      %s232 = scalar_lea.vmem %s1, %s231
      %p233 = pneg %p85
      %p234 = pneg %p82
      %p235 = pneg %p106
      %p236 = pneg %p103
      %p237 = pneg %p127
      %p238 = pneg %p124
      %p239 = pneg %p155
      %p240 = pneg %p152
      %s241 = smul.u32 2, %s21
      %p242 = scmp.lt.s32.totalorder %s20, 1
      %s243 = scalar_select %p242, %s20, 1
      %p244 = scmp.lt.s32.totalorder %s241, 1
      %s245 = scalar_select %p244, %s241, 1
      %s246 = smul.addr %s243, 2
      %s247 = sadd.s32 %s245, %s246
      %s248 = smul.addr %s247, 8
      %s249 = scalar_lea.vmem %s4, %s248
      %s250 = smul.u32 5, %s22
      %s251 = smul.u32 2, %s21
      %p252 = scmp.lt.s32.totalorder %s20, 1
      %s253 = scalar_select %p252, %s20, 1
      %p254 = scmp.lt.s32.totalorder %s250, 4
      %s255 = scalar_select %p254, %s250, 4
      %p256 = scmp.lt.s32.totalorder %s251, 1
      %s257 = scalar_select %p256, %s251, 1
      %s258 = smul.addr %s255, 2
      %s259 = sadd.s32 %s257, %s258
      %s260 = smul.addr %s253, 10
      %s261 = sadd.s32 %s259, %s260
      %s262 = smul.addr %s261, 4
      %s263 = scalar_lea.vmem %s0, %s262
      %s264 = smul.u32 5, %s22
      %s265 = smul.u32 2, %s21
      %p266 = scmp.lt.s32.totalorder %s22, 0
      %s267 = scalar_select %p266, %s22, 0
      %s268 = smul.addr %s267, 4
      %s269 = scalar_lea.vmem %s1, %s268
      %s270 = smul.u32 2, %s21
      %p271 = scmp.lt.s32.totalorder %s20, 1
      %s272 = scalar_select %p271, %s20, 1
      %p273 = scmp.lt.s32.totalorder %s270, 1
      %s274 = scalar_select %p273, %s270, 1
      %s275 = smul.addr %s272, 2
      %s276 = sadd.s32 %s274, %s275
      %s277 = smul.addr %s276, 8
      %s278 = scalar_lea.vmem %s4, %s277
      %s279 = smul.u32 2, %s21
      %p281 = scmp.eq.s32.totalorder %s22, 0
      // Predicated region
      $region37: #{deform_conv_forward.1} parent=35 // pred_check
        %p282 = pneg %p281
      $region38: #{deform_conv_forward.1} parent=35 // pred_check_branch
        %284 = sbr.rel (%p282) target = $region40
      $region39: #{deform_conv_forward.1} parent=35 // pred_region
        %285 = vst [vmem:[#allocation2] sm:$0xff] 0.0
        %286 = vst [vmem:[#allocation2 + $0x8] sm:$0xff] 0.0
      $region40: #{deform_conv_forward.1} parent=35 // pred_fallthru
        _
      %v287 = vld [vmem:[#allocation2] sm:$0xff]
      %v288 = vld [vmem:[#allocation2 + $0x8] sm:$0xff]
      %v289 = vld [vmem:[%s269] sm:$0xf]
      %v290 = vld [vmem:[%s263] sm:$0xff]
      %v291 = vld [vmem:[%s263 + $0x8] sm:$0xff]
      %v292 = vld [vmem:[%s263 + $0x10] sm:$0xff]
      %v293 = vld [vmem:[%s263 + $0x18] sm:$0xff]
      %v294 = vld [vmem:[%s263 + $0x20] sm:$0x33]
      %v300 = vunpack.c.l.b16 %v290
      %v301 = vunpack.c.h.b16 %v290
      %v302 = vunpack.c.l.b16 %v291
      %v303 = vunpack.c.h.b16 %v291
      %v304 = vunpack.c.l.b16 %v292
      %v305 = vunpack.c.h.b16 %v292
      %v306 = vunpack.c.l.b16 %v293
      %v307 = vunpack.c.h.b16 %v293
      %v308 = vunpack.c.l.b16 %v294
      %v309 = vunpack.c.h.b16 %v294
      %v310 = vpack.c.b16 %v302, %v300
      %v311 = vpack.c.b16 %v303, %v301
      %v312 = vpack.c.b16 %v306, %v304
      %v313 = vpack.c.b16 %v307, %v305
      %v314 = vpack.c.b16 %v308, %v308
      %v315 = vpack.c.b16 %v309, %v309
      %vm320 = vcmask 293888
      %v322 = vsel %vm320, %v289, 0
      %vm324 = vcmask 1041408
      %v326 = vsel %vm324, %v314, 0
      %v329 = vsel %vm324, %v315, 0
      %331 = vmatprep.subr.bf16.mxu0 %v311
      %332 = vmatpush1.bf16.msra.mxu0 %v310
      %333 = vmatprep.subr.bf16.mxu0 %v313
      %334 = vmatpush1.bf16.msra.mxu0 %v312
      %335 = vmatprep.subr.bf16.mxu0 %v329
      %336 = vmatpush1.bf16.msra.mxu0 %v326
      %337 = vmatprep.subr.bf16.mxu0 0
      %338 = vmatpush1.bf16.msra.mxu0 0
      %339 = vmatprep.subr.bf16.mxu0 0
      %340 = vmatpush1.bf16.msra.mxu0 0
      %341 = vmatprep.subr.bf16.mxu0 0
      %342 = vmatpush1.bf16.msra.mxu0 0
      %343 = vmatprep.subr.bf16.mxu0 0
      %344 = vmatpush1.bf16.msra.mxu0 0
      %345 = vmatprep.subr.bf16.mxu0 0
      %346 = vmatpush1.bf16.msra.mxu0 0
      %347 = vmatprep.subr.bf16.mxu0 0
      %348 = vmatpush1.bf16.msra.mxu0 0
      %349 = vmatprep.subr.bf16.mxu0 0
      %350 = vmatpush1.bf16.msra.mxu0 0
      %351 = vmatprep.subr.bf16.mxu0 0
      %352 = vmatpush1.bf16.msra.mxu0 0
      %353 = vmatprep.subr.bf16.mxu0 0
      %354 = vmatpush1.bf16.msra.mxu0 0
      %355 = vmatprep.subr.bf16.mxu0 0
      %356 = vmatpush1.bf16.msra.mxu0 0
      %357 = vmatprep.subr.bf16.mxu0 0
      %358 = vmatpush1.bf16.msra.mxu0 0
      %359 = vmatprep.subr.bf16.mxu0 0
      %360 = vmatpush1.bf16.msra.mxu0 0
      %361 = vmatprep.subr.bf16.mxu0 0
      %362 = vmatpush1.bf16.msra.mxu0 0
      %363 = vmatprep.mubr.bf16.mxu0 0
      %364 = vmatmul.mubr.bf16.gmra.mrb[0].mxu0 %v322
      %v365 = vpop.f32.mrb[0].mxu0
      %v366 = vadd.f32 0.0, %v365
      %v367 = vpop.f32.mrb[0].mxu0
      %v368 = vadd.f32 0.0, %v367
      %v369 = vpop.f32.mrb[0].mxu0
      %v370 = vpop.f32.mrb[0].mxu0
      %371 = vdwg.mxu0
      %v372 = vadd.f32 %v287, %v366
      %v373 = vadd.f32 %v288, %v368
      %374 = vst [vmem:[#allocation2] sm:$0xff] %v372
      %375 = vst [vmem:[#allocation2 + $0x8] sm:$0xff] %v373
      // Predicated region
      $region41: #{deform_conv_forward.1} parent=35 // pred_check
        %p376 = pneg %p281
      $region42: #{deform_conv_forward.1} parent=35 // pred_check_branch
        %378 = sbr.rel (%p376) target = $region44
      $region43: #{deform_conv_forward.1} parent=35 // pred_region
        %v379 = vld [vmem:[#allocation2] sm:$0xff]
        %v380 = vld [vmem:[#allocation2 + $0x8] sm:$0xff]
        %v381 = vld [vmem:[%s2] sm:$0xff]
        %383 = vset.pattern.permute.xlu0 0
        %384 = vperm.xlu0 %383, %v381
        %v385 = vpop.permute.xlu0 %384
        %v387 = vmul.f32 %v379, %v385
        %v388 = vmul.f32 %v380, %v385
        %v389 = vld [vmem:[%s3] sm:$0xff]
        %391 = vset.pattern.permute.xlu0 0
        %392 = vperm.xlu0 %391, %v389
        %v393 = vpop.permute.xlu0 %392
        %v395 = vadd.f32 %v387, %v393
        %v396 = vadd.f32 %v388, %v393
        %v397 = vmax.f32 %v395, 0.0
        %v398 = vmax.f32 %v396, 0.0
        %399 = vst [vmem:[%s278] sm:$0xff] %v397
        %400 = vst [vmem:[%s278 + $0x8] sm:$0xff] %v398
      $region44: #{deform_conv_forward.1} parent=35 // pred_fallthru
        _
      %s401 = smul.u32 2, %s21
      %p402 = scmp.lt.s32.totalorder %s20, 1
      %s403 = scalar_select %p402, %s20, 1
      %p404 = scmp.lt.s32.totalorder %s401, 1
      %s405 = scalar_select %p404, %s401, 1
      %s406 = smul.addr %s403, 2
      %s407 = sadd.s32 %s405, %s406
      %s408 = smul.addr %s407, 8
      %s409 = scalar_lea.vmem %s4, %s408
      // Predicated region
      $region45: #{deform_conv_forward.1} parent=35 // pred_check
        %p410 = pneg %p152
      $region46: #{deform_conv_forward.1} parent=35 // pred_check_branch
        %412 = sbr.rel (%p410) target = $region48
      $region47: #{deform_conv_forward.1} parent=35 // pred_region
        %s413 = smul.u32 2, %s21
      $region48: #{deform_conv_forward.1} parent=35 // pred_fallthru
        _
    $region36: #{deform_conv_forward.1} parent=5 // pred_fallthru
      _
    %p414 = scmp.le.s32.totalorder 2, %s10
    // Predicated region
    $region49: #{deform_conv_forward.1} parent=5 // pred_check
      %p415 = pneg %p414
    $region50: #{deform_conv_forward.1} parent=5 // pred_check_branch
      %417 = sbr.rel (%p415) target = $region52
    $region51: #{deform_conv_forward.1} parent=5 // pred_region
      %s418 = ssub.s32 %s10, 2
      // Predicated region
      $region53: #{deform_conv_forward.1} parent=51 // pred_check
        %p419 = pneg %p158
      $region54: #{deform_conv_forward.1} parent=51 // pred_check_branch
        %421 = sbr.rel (%p419) target = $region56
      $region55: #{deform_conv_forward.1} parent=51 // pred_region
        %s422 = smul.u32 2, %s24
        %p423 = scmp.lt.s32.totalorder %s23, 1
        %s424 = scalar_select %p423, %s23, 1
        %p425 = scmp.lt.s32.totalorder %s422, 1
        %s426 = scalar_select %p425, %s422, 1
        %s427 = smul.addr %s424, 2
        %s428 = sadd.s32 %s426, %s427
        %s429 = smul.addr %s428, 8
        %s430 = scalar_lea.vmem %s4, %s429
      $region56: #{deform_conv_forward.1} parent=51 // pred_fallthru
        _
    $region52: #{deform_conv_forward.1} parent=5 // pred_fallthru
      _
  $region6: #{deform_conv_forward.1} parent=0 // loop_footer
    %s14 = sadd.s32 1, %s10
  $region7: #{deform_conv_forward.1} parent=0 // loop_footer_branch
    %9 = sbr.rel target = $region3
  $region8: #{deform_conv_forward.1} parent=0 // loop_exit
    _

</llo_original>
